<compile_context>
chip_gen: v7x
topology: tpu7x:2x2x1
jax: 0.10.0
libtpu: 0.0.40
codegen_flags: <defaults>
</compile_context>

<pallas_src>
import functools

import numpy as np
import jax
import jax.numpy as jnp
from jax.experimental import pallas as pl
from jax.experimental.pallas import tpu as pltpu


# ----------------------------- fused ResidualBlock kernel --------------------

def _resblock_kernel(x_ref, w1_ref, w2_ref, mask_ref, o_ref,
                     pad_ref, col_ref, *, C, H, W, eps):
    """One grid step == one batch element; everything stays in VMEM.

    x_ref   : (1, C, H*W)  f32  -- NCHW sample with spatial flattened (lane-dense)
    w1_ref  : (C, 9*C)     bf16 -- conv1 weights packed (co, (ky,kx,ci)) at build time
    w2_ref  : (C, 9*C)     bf16 -- conv2 weights, same packing
    mask_ref: (2, H*W)     bf16 -- row-wrap masks: [0]=valid for dx=-1, [1]=dx=+1
    o_ref   : (1, C, H*W)  f32  -- output sample
    pad_ref : (C, H*W + 2*(W+1)) bf16 VMEM -- flat zero-halo staging buffer
    col_ref : (9*C, H*W)   bf16 VMEM -- tap-stacked im2col (reused by both convs)
    """
    N = H * W
    M = W + 1                          # flat halo size: max |tap offset| = W + 1

    # Zero only the two halo margins; the interior is fully overwritten below.
    # Done every step (NOT under program_id==0): scratch is per-TensorCore when the
    # batch axis is sharded across cores, so step 0 may never run on a given core.
    zeros_margin = jnp.zeros((C, M), pad_ref.dtype)
    pad_ref[:, 0:M] = zeros_margin
    pad_ref[:, M + N:M + N + M] = zeros_margin

    x = x_ref[0]                       # (C, N) f32, kept live for the residual add
    left_ok = mask_ref[0:1, :]         # (1, N) bf16: 0 where w == 0   (dx = -1 tap)
    right_ok = mask_ref[1:2, :]        # (1, N) bf16: 0 where w == W-1 (dx = +1 tap)

    def build_im2col(src_bf):
        """Stack the 9 shifted taps of `src_bf` (C, N) into col_ref (9C, N)."""
        pad_ref[:, M:M + N] = src_bf
        k = 0
        for dy in (-1, 0, 1):
            for dx in (-1, 0, 1):
                off = M + dy * W + dx                  # static, in [0, 2*(W+1)]
                tap = pad_ref[:, off:off + N]          # (C, N) lane-dense slice
                if dx == -1:                           # kill wrap across row start
                    tap = tap * left_ok
                elif dx == 1:                          # kill wrap across row end
                    tap = tap * right_ok
                col_ref[k * C:(k + 1) * C, :] = tap
                k += 1

    def instance_norm(a):
        # Single-pass stats (sum & sum-of-squares while `a` is live), biased var.
        inv_n = 1.0 / N
        s = jnp.sum(a, axis=1, keepdims=True)
        ss = jnp.sum(a * a, axis=1, keepdims=True)
        mu = s * inv_n
        var = jnp.maximum(ss * inv_n - mu * mu, 0.0)
        return (a - mu) * jax.lax.rsqrt(var + eps)

    # ---- conv1 (3x3, pad=1, no bias) -> IN -> ReLU, all in VMEM --------------
    build_im2col(x.astype(jnp.bfloat16))               # single bf16 cast per conv
    a1 = jnp.dot(w1_ref[...], col_ref[...], preferred_element_type=jnp.float32)
    y = jnp.maximum(instance_norm(a1), 0.0)            # (C, N) f32

    # ---- conv2 (3x3, pad=1, no bias) -> IN -> residual add -------------------
    build_im2col(y.astype(jnp.bfloat16))
    a2 = jnp.dot(w2_ref[...], col_ref[...], preferred_element_type=jnp.float32)
    o_ref[0] = x + instance_norm(a2)


# ----------------------------- wrapper ----------------------------------------

def pack_conv_weights(w_oihw):
    """PyTorch (Cout, Cin, 3, 3) -> (Cout, 9*Cin) bf16, column order (ky, kx, ci).

    Done ONCE at param-build time (hoisted out of the forward pass).
    """
    Cout, Cin, kh, kw = w_oihw.shape
    return (jnp.transpose(w_oihw, (0, 2, 3, 1))
            .reshape(Cout, kh * kw * Cin)
            .astype(jnp.bfloat16))


@jax.jit
def residual_block(x, w1_packed, w2_packed):
    """x: (B, C, H, W) f32 NCHW (matching the PyTorch module). Returns NCHW f32."""
    B, C, H, W = x.shape
    N = H * W

    # 0/1 masks for the dx = -1 / +1 taps (row-wrap suppression), built at trace time.
    col = np.arange(N) % W
    masks = jnp.asarray(np.stack([(col != 0), (col != W - 1)]).astype(np.float32),
                        dtype=jnp.bfloat16)                     # (2, N)

    # Free reshape: keeps NCHW memory order (no transpose, no pad, no extra HBM pass).
    x_flat = x.reshape(B, C, N)

    out = pl.pallas_call(
        functools.partial(_resblock_kernel, C=C, H=H, W=W, eps=1e-5),
        out_shape=jax.ShapeDtypeStruct((B, C, N), jnp.float32),
        grid=(B,),
        in_specs=[
            pl.BlockSpec((1, C, N), lambda b: (b, 0, 0)),        # x (lane-dense)
            pl.BlockSpec((C, 9 * C), lambda b: (0, 0)),          # conv1 weights
            pl.BlockSpec((C, 9 * C), lambda b: (0, 0)),          # conv2 weights
            pl.BlockSpec((2, N), lambda b: (0, 0)),              # boundary masks
        ],
        out_specs=pl.BlockSpec((1, C, N), lambda b: (b, 0, 0)),
        scratch_shapes=[
            pltpu.VMEM((C, N + 2 * (W + 1)), jnp.bfloat16),      # flat zero-halo buf
            pltpu.VMEM((9 * C, N), jnp.bfloat16),                # tap-stacked im2col
        ],
        compiler_params=pltpu.CompilerParams(
            dimension_semantics=("parallel",)),   # shard batch across TCs (megacore)
    )(x_flat, w1_packed, w2_packed, masks)

    return out.reshape(B, C, H, W)


# ----------------------------- pure-JAX reference ------------------------------

def _ref_residual_block(x, w1, w2, eps=1e-5):
    def conv(h, w):
        return jax.lax.conv_general_dilated(
            h, w, window_strides=(1, 1), padding=((1, 1), (1, 1)),
            dimension_numbers=('NCHW', 'OIHW', 'NCHW'))

    def inorm(h):
        mu = jnp.mean(h, axis=(2, 3), keepdims=True)
        var = jnp.mean((h - mu) ** 2, axis=(2, 3), keepdims=True)
        return (h - mu) * jax.lax.rsqrt(var + eps)

    y = jnp.maximum(inorm(conv(x, w1)), 0.0)
    return x + inorm(conv(y, w2))


# ----------------------------- demo --------------------------------------------

if __name__ == "__main__":
    B, C, H, W = 2, 4, 16, 16

    key = jax.random.PRNGKey(0)
    kx, k1, k2 = jax.random.split(key, 3)
    x = jax.random.normal(kx, (B, C, H, W), jnp.float32)
    w1 = 0.1 * jax.random.normal(k1, (C, C, 3, 3), jnp.float32)  # Conv2d(C,C,3,p=1,bias=False)
    w2 = 0.1 * jax.random.normal(k2, (C, C, 3, 3), jnp.float32)

    # Weights packed/cast once at build time (hoisted out of the forward).
    w1p = pack_conv_weights(w1)
    w2p = pack_conv_weights(w2)

    out = residual_block(x, w1p, w2p)
    out = jax.block_until_ready(out)

    assert out.shape == (B, C, H, W), out.shape
    assert bool(jnp.all(jnp.isfinite(out)))

    # Correctness vs. pure-JAX reference (bf16 MXU inputs -> loose tolerance).
    ref = _ref_residual_block(x, w1, w2)
    err = float(jnp.max(jnp.abs(out - ref)))
    assert err < 1e-1, f"max abs error vs reference: {err}"

    print("KERNEL_OK")
</pallas_src>

<mosaic_0001>
module attributes {stable_mosaic.version = 11 : i64} {
  func.func @_resblock_kernel(%arg0: i32, %arg1: memref<1x4x256xf32, #tpu.memory_space<vmem>>, %arg2: memref<4x36xbf16, #tpu.memory_space<vmem>>, %arg3: memref<4x36xbf16, #tpu.memory_space<vmem>>, %arg4: memref<2x256xbf16, #tpu.memory_space<vmem>>, %arg5: memref<1x4x256xf32, #tpu.memory_space<vmem>>, %arg6: memref<4x290xbf16, #tpu.memory_space<vmem>>, %arg7: memref<36x256xbf16, #tpu.memory_space<vmem>>) attributes {dimension_semantics = [#tpu.dimension_semantics<parallel>], iteration_bounds = array<i64: 2>, scalar_prefetch = 0 : i64, scratch_operands = 2 : i64, tpu.core_type = #tpu.core_type<tc>, window_params = [{transform_indices = @transform_0, window_bounds = array<i64: 1, 4, 256>}, {pipeline_mode = #tpu.pipeline_mode<synchronous>, transform_indices = @transform_1, window_bounds = array<i64: 4, 36>}, {pipeline_mode = #tpu.pipeline_mode<synchronous>, transform_indices = @transform_2, window_bounds = array<i64: 4, 36>}, {pipeline_mode = #tpu.pipeline_mode<synchronous>, transform_indices = @transform_3, window_bounds = array<i64: 2, 256>}, {transform_indices = @transform_4, window_bounds = array<i64: 1, 4, 256>}]} {
    %cst = arith.constant 0.000000e+00 : bf16
    %0 = vector.broadcast %cst : bf16 to vector<4x17xbf16>
    %c0 = arith.constant 0 : index
    %c0_0 = arith.constant 0 : index
    %1 = vector.load %arg6[%c0, %c0_0] : memref<4x290xbf16, #tpu.memory_space<vmem>>, vector<4x17xbf16>
    tpu.vector_store %arg6[%c0, %c0_0], %0 {strides = array<i32>} : memref<4x290xbf16, #tpu.memory_space<vmem>>, vector<4x17xbf16>,
    %c0_1 = arith.constant 0 : index
    %c273 = arith.constant 273 : index
    %2 = vector.load %arg6[%c0_1, %c273] : memref<4x290xbf16, #tpu.memory_space<vmem>>, vector<4x17xbf16>
    tpu.vector_store %arg6[%c0_1, %c273], %0 {strides = array<i32>} : memref<4x290xbf16, #tpu.memory_space<vmem>>, vector<4x17xbf16>,
    %c0_2 = arith.constant 0 : index
    %c0_3 = arith.constant 0 : index
    %c0_4 = arith.constant 0 : index
    %3 = vector.load %arg1[%c0_2, %c0_3, %c0_4] : memref<1x4x256xf32, #tpu.memory_space<vmem>>, vector<1x4x256xf32>
    %4 = vector.shape_cast %3 : vector<1x4x256xf32> to vector<4x256xf32>
    %c0_5 = arith.constant 0 : index
    %c0_6 = arith.constant 0 : index
    %5 = vector.load %arg4[%c0_5, %c0_6] : memref<2x256xbf16, #tpu.memory_space<vmem>>, vector<1x256xbf16>
    %c1 = arith.constant 1 : index
    %c0_7 = arith.constant 0 : index
    %6 = vector.load %arg4[%c1, %c0_7] : memref<2x256xbf16, #tpu.memory_space<vmem>>, vector<1x256xbf16>
    %7 = arith.truncf %4 : vector<4x256xf32> to vector<4x256xbf16>
    %c0_8 = arith.constant 0 : index
    %c17 = arith.constant 17 : index
    %8 = vector.load %arg6[%c0_8, %c17] : memref<4x290xbf16, #tpu.memory_space<vmem>>, vector<4x256xbf16>
    tpu.vector_store %arg6[%c0_8, %c17], %7 {strides = array<i32>} : memref<4x290xbf16, #tpu.memory_space<vmem>>, vector<4x256xbf16>,
    %c0_9 = arith.constant 0 : index
    %c0_10 = arith.constant 0 : index
    %9 = vector.load %arg6[%c0_9, %c0_10] : memref<4x290xbf16, #tpu.memory_space<vmem>>, vector<4x256xbf16>
    %10 = vector.broadcast %5 : vector<1x256xbf16> to vector<4x256xbf16>
    %11 = arith.mulf %9, %10 : vector<4x256xbf16>
    %c0_11 = arith.constant 0 : index
    %c0_12 = arith.constant 0 : index
    %12 = vector.load %arg7[%c0_11, %c0_12] : memref<36x256xbf16, #tpu.memory_space<vmem>>, vector<4x256xbf16>
    tpu.vector_store %arg7[%c0_11, %c0_12], %11 {strides = array<i32>} : memref<36x256xbf16, #tpu.memory_space<vmem>>, vector<4x256xbf16>,
    %c0_13 = arith.constant 0 : index
    %c1_14 = arith.constant 1 : index
    %13 = vector.load %arg6[%c0_13, %c1_14] : memref<4x290xbf16, #tpu.memory_space<vmem>>, vector<4x256xbf16>
    %c4 = arith.constant 4 : index
    %c0_15 = arith.constant 0 : index
    %14 = vector.load %arg7[%c4, %c0_15] : memref<36x256xbf16, #tpu.memory_space<vmem>>, vector<4x256xbf16>
    tpu.vector_store %arg7[%c4, %c0_15], %13 {strides = array<i32>} : memref<36x256xbf16, #tpu.memory_space<vmem>>, vector<4x256xbf16>,
    %c0_16 = arith.constant 0 : index
    %c2 = arith.constant 2 : index
    %15 = vector.load %arg6[%c0_16, %c2] : memref<4x290xbf16, #tpu.memory_space<vmem>>, vector<4x256xbf16>
    %16 = vector.broadcast %6 : vector<1x256xbf16> to vector<4x256xbf16>
    %17 = arith.mulf %15, %16 : vector<4x256xbf16>
    %c8 = arith.constant 8 : index
    %c0_17 = arith.constant 0 : index
    %18 = vector.load %arg7[%c8, %c0_17] : memref<36x256xbf16, #tpu.memory_space<vmem>>, vector<4x256xbf16>
    tpu.vector_store %arg7[%c8, %c0_17], %17 {strides = array<i32>} : memref<36x256xbf16, #tpu.memory_space<vmem>>, vector<4x256xbf16>,
    %c0_18 = arith.constant 0 : index
    %c16 = arith.constant 16 : index
    %19 = vector.load %arg6[%c0_18, %c16] : memref<4x290xbf16, #tpu.memory_space<vmem>>, vector<4x256xbf16>
    %20 = vector.broadcast %5 : vector<1x256xbf16> to vector<4x256xbf16>
    %21 = arith.mulf %19, %20 : vector<4x256xbf16>
    %c12 = arith.constant 12 : index
    %c0_19 = arith.constant 0 : index
    %22 = vector.load %arg7[%c12, %c0_19] : memref<36x256xbf16, #tpu.memory_space<vmem>>, vector<4x256xbf16>
    tpu.vector_store %arg7[%c12, %c0_19], %21 {strides = array<i32>} : memref<36x256xbf16, #tpu.memory_space<vmem>>, vector<4x256xbf16>,
    %c0_20 = arith.constant 0 : index
    %c17_21 = arith.constant 17 : index
    %23 = vector.load %arg6[%c0_20, %c17_21] : memref<4x290xbf16, #tpu.memory_space<vmem>>, vector<4x256xbf16>
    %c16_22 = arith.constant 16 : index
    %c0_23 = arith.constant 0 : index
    %24 = vector.load %arg7[%c16_22, %c0_23] : memref<36x256xbf16, #tpu.memory_space<vmem>>, vector<4x256xbf16>
    tpu.vector_store %arg7[%c16_22, %c0_23], %23 {strides = array<i32>} : memref<36x256xbf16, #tpu.memory_space<vmem>>, vector<4x256xbf16>,
    %c0_24 = arith.constant 0 : index
    %c18 = arith.constant 18 : index
    %25 = vector.load %arg6[%c0_24, %c18] : memref<4x290xbf16, #tpu.memory_space<vmem>>, vector<4x256xbf16>
    %26 = vector.broadcast %6 : vector<1x256xbf16> to vector<4x256xbf16>
    %27 = arith.mulf %25, %26 : vector<4x256xbf16>
    %c20 = arith.constant 20 : index
    %c0_25 = arith.constant 0 : index
    %28 = vector.load %arg7[%c20, %c0_25] : memref<36x256xbf16, #tpu.memory_space<vmem>>, vector<4x256xbf16>
    tpu.vector_store %arg7[%c20, %c0_25], %27 {strides = array<i32>} : memref<36x256xbf16, #tpu.memory_space<vmem>>, vector<4x256xbf16>,
    %c0_26 = arith.constant 0 : index
    %c32 = arith.constant 32 : index
    %29 = vector.load %arg6[%c0_26, %c32] : memref<4x290xbf16, #tpu.memory_space<vmem>>, vector<4x256xbf16>
    %30 = vector.broadcast %5 : vector<1x256xbf16> to vector<4x256xbf16>
    %31 = arith.mulf %29, %30 : vector<4x256xbf16>
    %c24 = arith.constant 24 : index
    %c0_27 = arith.constant 0 : index
    %32 = vector.load %arg7[%c24, %c0_27] : memref<36x256xbf16, #tpu.memory_space<vmem>>, vector<4x256xbf16>
    tpu.vector_store %arg7[%c24, %c0_27], %31 {strides = array<i32>} : memref<36x256xbf16, #tpu.memory_space<vmem>>, vector<4x256xbf16>,
    %c0_28 = arith.constant 0 : index
    %c33 = arith.constant 33 : index
    %33 = vector.load %arg6[%c0_28, %c33] : memref<4x290xbf16, #tpu.memory_space<vmem>>, vector<4x256xbf16>
    %c28 = arith.constant 28 : index
    %c0_29 = arith.constant 0 : index
    %34 = vector.load %arg7[%c28, %c0_29] : memref<36x256xbf16, #tpu.memory_space<vmem>>, vector<4x256xbf16>
    tpu.vector_store %arg7[%c28, %c0_29], %33 {strides = array<i32>} : memref<36x256xbf16, #tpu.memory_space<vmem>>, vector<4x256xbf16>,
    %c0_30 = arith.constant 0 : index
    %c34 = arith.constant 34 : index
    %35 = vector.load %arg6[%c0_30, %c34] : memref<4x290xbf16, #tpu.memory_space<vmem>>, vector<4x256xbf16>
    %36 = vector.broadcast %6 : vector<1x256xbf16> to vector<4x256xbf16>
    %37 = arith.mulf %35, %36 : vector<4x256xbf16>
    %c32_31 = arith.constant 32 : index
    %c0_32 = arith.constant 0 : index
    %38 = vector.load %arg7[%c32_31, %c0_32] : memref<36x256xbf16, #tpu.memory_space<vmem>>, vector<4x256xbf16>
    tpu.vector_store %arg7[%c32_31, %c0_32], %37 {strides = array<i32>} : memref<36x256xbf16, #tpu.memory_space<vmem>>, vector<4x256xbf16>,
    %c0_33 = arith.constant 0 : index
    %c0_34 = arith.constant 0 : index
    %39 = vector.load %arg2[%c0_33, %c0_34] : memref<4x36xbf16, #tpu.memory_space<vmem>>, vector<4x36xbf16>
    %c0_35 = arith.constant 0 : index
    %c0_36 = arith.constant 0 : index
    %40 = vector.load %arg7[%c0_35, %c0_36] : memref<36x256xbf16, #tpu.memory_space<vmem>>, vector<36x256xbf16>
    %cst_37 = arith.constant dense<0.000000e+00> : vector<4x256xf32>
    %41 = tpu.matmul %39, %40, %cst_37 {dimension_numbers = #tpu.dot_dimension_numbers<[1], [0], [0], [1], [0, 0, 1, 1], [], []>} : vector<4x36xbf16>, vector<36x256xbf16>, vector<4x256xf32> -> vector<4x256xf32>
    %cst_38 = arith.constant dense<0.000000e+00> : vector<4xf32>
    %42 = vector.multi_reduction <add>, %41, %cst_38 [1] : vector<4x256xf32> to vector<4xf32>
    %43 = vector.shape_cast %42 : vector<4xf32> to vector<4x1xf32>
    %44 = arith.mulf %41, %41 : vector<4x256xf32>
    %cst_39 = arith.constant dense<0.000000e+00> : vector<4xf32>
    %45 = vector.multi_reduction <add>, %44, %cst_39 [1] : vector<4x256xf32> to vector<4xf32>
    %46 = vector.shape_cast %45 : vector<4xf32> to vector<4x1xf32>
    %cst_40 = arith.constant 3.906250e-03 : f32
    %47 = vector.broadcast %cst_40 : f32 to vector<4x1xf32>
    %48 = arith.mulf %43, %47 : vector<4x1xf32>
    %cst_41 = arith.constant 3.906250e-03 : f32
    %49 = vector.broadcast %cst_41 : f32 to vector<4x1xf32>
    %50 = arith.mulf %46, %49 : vector<4x1xf32>
    %51 = arith.mulf %48, %48 : vector<4x1xf32>
    %52 = arith.subf %50, %51 : vector<4x1xf32>
    %cst_42 = arith.constant 0.000000e+00 : f32
    %53 = vector.broadcast %cst_42 : f32 to vector<4x1xf32>
    %54 = arith.maximumf %52, %53 : vector<4x1xf32>
    %55 = vector.broadcast %48 : vector<4x1xf32> to vector<4x256xf32>
    %56 = arith.subf %41, %55 : vector<4x256xf32>
    %cst_43 = arith.constant 9.99999974E-6 : f32
    %57 = vector.broadcast %cst_43 : f32 to vector<4x1xf32>
    %58 = arith.addf %54, %57 : vector<4x1xf32>
    %59 = math.rsqrt %58 : vector<4x1xf32>
    %60 = vector.broadcast %59 : vector<4x1xf32> to vector<4x256xf32>
    %61 = arith.mulf %56, %60 : vector<4x256xf32>
    %cst_44 = arith.constant 0.000000e+00 : f32
    %62 = vector.broadcast %cst_44 : f32 to vector<4x256xf32>
    %63 = arith.maximumf %61, %62 : vector<4x256xf32>
    %64 = arith.truncf %63 : vector<4x256xf32> to vector<4x256xbf16>
    %c0_45 = arith.constant 0 : index
    %c17_46 = arith.constant 17 : index
    %65 = vector.load %arg6[%c0_45, %c17_46] : memref<4x290xbf16, #tpu.memory_space<vmem>>, vector<4x256xbf16>
    tpu.vector_store %arg6[%c0_45, %c17_46], %64 {strides = array<i32>} : memref<4x290xbf16, #tpu.memory_space<vmem>>, vector<4x256xbf16>,
    %c0_47 = arith.constant 0 : index
    %c0_48 = arith.constant 0 : index
    %66 = vector.load %arg6[%c0_47, %c0_48] : memref<4x290xbf16, #tpu.memory_space<vmem>>, vector<4x256xbf16>
    %67 = vector.broadcast %5 : vector<1x256xbf16> to vector<4x256xbf16>
    %68 = arith.mulf %66, %67 : vector<4x256xbf16>
    %c0_49 = arith.constant 0 : index
    %c0_50 = arith.constant 0 : index
    %69 = vector.load %arg7[%c0_49, %c0_50] : memref<36x256xbf16, #tpu.memory_space<vmem>>, vector<4x256xbf16>
    tpu.vector_store %arg7[%c0_49, %c0_50], %68 {strides = array<i32>} : memref<36x256xbf16, #tpu.memory_space<vmem>>, vector<4x256xbf16>,
    %c0_51 = arith.constant 0 : index
    %c1_52 = arith.constant 1 : index
    %70 = vector.load %arg6[%c0_51, %c1_52] : memref<4x290xbf16, #tpu.memory_space<vmem>>, vector<4x256xbf16>
    %c4_53 = arith.constant 4 : index
    %c0_54 = arith.constant 0 : index
    %71 = vector.load %arg7[%c4_53, %c0_54] : memref<36x256xbf16, #tpu.memory_space<vmem>>, vector<4x256xbf16>
    tpu.vector_store %arg7[%c4_53, %c0_54], %70 {strides = array<i32>} : memref<36x256xbf16, #tpu.memory_space<vmem>>, vector<4x256xbf16>,
    %c0_55 = arith.constant 0 : index
    %c2_56 = arith.constant 2 : index
    %72 = vector.load %arg6[%c0_55, %c2_56] : memref<4x290xbf16, #tpu.memory_space<vmem>>, vector<4x256xbf16>
    %73 = vector.broadcast %6 : vector<1x256xbf16> to vector<4x256xbf16>
    %74 = arith.mulf %72, %73 : vector<4x256xbf16>
    %c8_57 = arith.constant 8 : index
    %c0_58 = arith.constant 0 : index
    %75 = vector.load %arg7[%c8_57, %c0_58] : memref<36x256xbf16, #tpu.memory_space<vmem>>, vector<4x256xbf16>
    tpu.vector_store %arg7[%c8_57, %c0_58], %74 {strides = array<i32>} : memref<36x256xbf16, #tpu.memory_space<vmem>>, vector<4x256xbf16>,
    %c0_59 = arith.constant 0 : index
    %c16_60 = arith.constant 16 : index
    %76 = vector.load %arg6[%c0_59, %c16_60] : memref<4x290xbf16, #tpu.memory_space<vmem>>, vector<4x256xbf16>
    %77 = vector.broadcast %5 : vector<1x256xbf16> to vector<4x256xbf16>
    %78 = arith.mulf %76, %77 : vector<4x256xbf16>
    %c12_61 = arith.constant 12 : index
    %c0_62 = arith.constant 0 : index
    %79 = vector.load %arg7[%c12_61, %c0_62] : memref<36x256xbf16, #tpu.memory_space<vmem>>, vector<4x256xbf16>
    tpu.vector_store %arg7[%c12_61, %c0_62], %78 {strides = array<i32>} : memref<36x256xbf16, #tpu.memory_space<vmem>>, vector<4x256xbf16>,
    %c0_63 = arith.constant 0 : index
    %c17_64 = arith.constant 17 : index
    %80 = vector.load %arg6[%c0_63, %c17_64] : memref<4x290xbf16, #tpu.memory_space<vmem>>, vector<4x256xbf16>
    %c16_65 = arith.constant 16 : index
    %c0_66 = arith.constant 0 : index
    %81 = vector.load %arg7[%c16_65, %c0_66] : memref<36x256xbf16, #tpu.memory_space<vmem>>, vector<4x256xbf16>
    tpu.vector_store %arg7[%c16_65, %c0_66], %80 {strides = array<i32>} : memref<36x256xbf16, #tpu.memory_space<vmem>>, vector<4x256xbf16>,
    %c0_67 = arith.constant 0 : index
    %c18_68 = arith.constant 18 : index
    %82 = vector.load %arg6[%c0_67, %c18_68] : memref<4x290xbf16, #tpu.memory_space<vmem>>, vector<4x256xbf16>
    %83 = vector.broadcast %6 : vector<1x256xbf16> to vector<4x256xbf16>
    %84 = arith.mulf %82, %83 : vector<4x256xbf16>
    %c20_69 = arith.constant 20 : index
    %c0_70 = arith.constant 0 : index
    %85 = vector.load %arg7[%c20_69, %c0_70] : memref<36x256xbf16, #tpu.memory_space<vmem>>, vector<4x256xbf16>
    tpu.vector_store %arg7[%c20_69, %c0_70], %84 {strides = array<i32>} : memref<36x256xbf16, #tpu.memory_space<vmem>>, vector<4x256xbf16>,
    %c0_71 = arith.constant 0 : index
    %c32_72 = arith.constant 32 : index
    %86 = vector.load %arg6[%c0_71, %c32_72] : memref<4x290xbf16, #tpu.memory_space<vmem>>, vector<4x256xbf16>
    %87 = vector.broadcast %5 : vector<1x256xbf16> to vector<4x256xbf16>
    %88 = arith.mulf %86, %87 : vector<4x256xbf16>
    %c24_73 = arith.constant 24 : index
    %c0_74 = arith.constant 0 : index
    %89 = vector.load %arg7[%c24_73, %c0_74] : memref<36x256xbf16, #tpu.memory_space<vmem>>, vector<4x256xbf16>
    tpu.vector_store %arg7[%c24_73, %c0_74], %88 {strides = array<i32>} : memref<36x256xbf16, #tpu.memory_space<vmem>>, vector<4x256xbf16>,
    %c0_75 = arith.constant 0 : index
    %c33_76 = arith.constant 33 : index
    %90 = vector.load %arg6[%c0_75, %c33_76] : memref<4x290xbf16, #tpu.memory_space<vmem>>, vector<4x256xbf16>
    %c28_77 = arith.constant 28 : index
    %c0_78 = arith.constant 0 : index
    %91 = vector.load %arg7[%c28_77, %c0_78] : memref<36x256xbf16, #tpu.memory_space<vmem>>, vector<4x256xbf16>
    tpu.vector_store %arg7[%c28_77, %c0_78], %90 {strides = array<i32>} : memref<36x256xbf16, #tpu.memory_space<vmem>>, vector<4x256xbf16>,
    %c0_79 = arith.constant 0 : index
    %c34_80 = arith.constant 34 : index
    %92 = vector.load %arg6[%c0_79, %c34_80] : memref<4x290xbf16, #tpu.memory_space<vmem>>, vector<4x256xbf16>
    %93 = vector.broadcast %6 : vector<1x256xbf16> to vector<4x256xbf16>
    %94 = arith.mulf %92, %93 : vector<4x256xbf16>
    %c32_81 = arith.constant 32 : index
    %c0_82 = arith.constant 0 : index
    %95 = vector.load %arg7[%c32_81, %c0_82] : memref<36x256xbf16, #tpu.memory_space<vmem>>, vector<4x256xbf16>
    tpu.vector_store %arg7[%c32_81, %c0_82], %94 {strides = array<i32>} : memref<36x256xbf16, #tpu.memory_space<vmem>>, vector<4x256xbf16>,
    %c0_83 = arith.constant 0 : index
    %c0_84 = arith.constant 0 : index
    %96 = vector.load %arg3[%c0_83, %c0_84] : memref<4x36xbf16, #tpu.memory_space<vmem>>, vector<4x36xbf16>
    %c0_85 = arith.constant 0 : index
    %c0_86 = arith.constant 0 : index
    %97 = vector.load %arg7[%c0_85, %c0_86] : memref<36x256xbf16, #tpu.memory_space<vmem>>, vector<36x256xbf16>
    %cst_87 = arith.constant dense<0.000000e+00> : vector<4x256xf32>
    %98 = tpu.matmul %96, %97, %cst_87 {dimension_numbers = #tpu.dot_dimension_numbers<[1], [0], [0], [1], [0, 0, 1, 1], [], []>} : vector<4x36xbf16>, vector<36x256xbf16>, vector<4x256xf32> -> vector<4x256xf32>
    %cst_88 = arith.constant dense<0.000000e+00> : vector<4xf32>
    %99 = vector.multi_reduction <add>, %98, %cst_88 [1] : vector<4x256xf32> to vector<4xf32>
    %100 = vector.shape_cast %99 : vector<4xf32> to vector<4x1xf32>
    %101 = arith.mulf %98, %98 : vector<4x256xf32>
    %cst_89 = arith.constant dense<0.000000e+00> : vector<4xf32>
    %102 = vector.multi_reduction <add>, %101, %cst_89 [1] : vector<4x256xf32> to vector<4xf32>
    %103 = vector.shape_cast %102 : vector<4xf32> to vector<4x1xf32>
    %cst_90 = arith.constant 3.906250e-03 : f32
    %104 = vector.broadcast %cst_90 : f32 to vector<4x1xf32>
    %105 = arith.mulf %100, %104 : vector<4x1xf32>
    %cst_91 = arith.constant 3.906250e-03 : f32
    %106 = vector.broadcast %cst_91 : f32 to vector<4x1xf32>
    %107 = arith.mulf %103, %106 : vector<4x1xf32>
    %108 = arith.mulf %105, %105 : vector<4x1xf32>
    %109 = arith.subf %107, %108 : vector<4x1xf32>
    %cst_92 = arith.constant 0.000000e+00 : f32
    %110 = vector.broadcast %cst_92 : f32 to vector<4x1xf32>
    %111 = arith.maximumf %109, %110 : vector<4x1xf32>
    %112 = vector.broadcast %105 : vector<4x1xf32> to vector<4x256xf32>
    %113 = arith.subf %98, %112 : vector<4x256xf32>
    %cst_93 = arith.constant 9.99999974E-6 : f32
    %114 = vector.broadcast %cst_93 : f32 to vector<4x1xf32>
    %115 = arith.addf %111, %114 : vector<4x1xf32>
    %116 = math.rsqrt %115 : vector<4x1xf32>
    %117 = vector.broadcast %116 : vector<4x1xf32> to vector<4x256xf32>
    %118 = arith.mulf %113, %117 : vector<4x256xf32>
    %119 = arith.addf %4, %118 : vector<4x256xf32>
    %c0_94 = arith.constant 0 : index
    %c0_95 = arith.constant 0 : index
    %c0_96 = arith.constant 0 : index
    %120 = vector.load %arg5[%c0_94, %c0_95, %c0_96] : memref<1x4x256xf32, #tpu.memory_space<vmem>>, vector<1x4x256xf32>
    %121 = vector.shape_cast %120 : vector<1x4x256xf32> to vector<4x256xf32>
    %122 = vector.shape_cast %119 : vector<4x256xf32> to vector<1x4x256xf32>
    tpu.vector_store %arg5[%c0_94, %c0_95, %c0_96], %122 {strides = array<i32>} : memref<1x4x256xf32, #tpu.memory_space<vmem>>, vector<1x4x256xf32>,
    return
  }
  func.func @transform_0(%arg0: i32) -> (i32, i32, i32) {
    %c0_i32 = arith.constant 0 : i32
    %c0_i32_0 = arith.constant 0 : i32
    %c0_i32_1 = arith.constant 0 : i32
    return %arg0, %c0_i32, %c0_i32_0 : i32, i32, i32
  }
  func.func @transform_1(%arg0: i32) -> (i32, i32) {
    %c0_i32 = arith.constant 0 : i32
    %c0_i32_0 = arith.constant 0 : i32
    %c0_i32_1 = arith.constant 0 : i32
    return %c0_i32, %c0_i32_0 : i32, i32
  }
  func.func @transform_2(%arg0: i32) -> (i32, i32) {
    %c0_i32 = arith.constant 0 : i32
    %c0_i32_0 = arith.constant 0 : i32
    %c0_i32_1 = arith.constant 0 : i32
    return %c0_i32, %c0_i32_0 : i32, i32
  }
  func.func @transform_3(%arg0: i32) -> (i32, i32) {
    %c0_i32 = arith.constant 0 : i32
    %c0_i32_0 = arith.constant 0 : i32
    %c0_i32_1 = arith.constant 0 : i32
    return %c0_i32, %c0_i32_0 : i32, i32
  }
  func.func @transform_4(%arg0: i32) -> (i32, i32, i32) {
    %c0_i32 = arith.constant 0 : i32
    %c0_i32_0 = arith.constant 0 : i32
    %c0_i32_1 = arith.constant 0 : i32
    return %arg0, %c0_i32, %c0_i32_0 : i32, i32, i32
  }
}

</mosaic_0001>

<llo_original>
// kernel: residual_block.1
$region0: #{residual_block.1}
  #allocation0 [shape = 'u32[]', space=smem, size = 0x4, offset = 0x4, fixed_abs, tag = 'smem constant byte address 0x4 - core index']
  #allocation1 [shape = 'u32[144,128]{1,0:T(1,128)}', space=vmem, size = 0x12000, scoped, tag = 'internal scratch']
  #allocation2 [shape = 'bf16[4,290]{1,0:T(4,128)(2,1)}', space=vmem, size = 0xc00, scoped, tag = 'scratch operand']
  #allocation3 [shape = 'bf16[36,256]{1,0:T(8,128)(2,1)}', space=vmem, size = 0x5000, scoped, tag = 'scratch operand']
  %s0 = inlined_call_operand.vmem [shape: f32[2,4,256], index: 0, kind: input, shape index: {}]
  %s1 = inlined_call_operand.vmem [shape: bf16[4,36], index: 1, kind: input, shape index: {}]
  %s2 = inlined_call_operand.vmem [shape: bf16[4,36], index: 2, kind: input, shape index: {}]
  %s3 = inlined_call_operand.vmem [shape: bf16[2,256], index: 3, kind: input, shape index: {}]
  %s4 = inlined_call_operand.vmem [shape: f32[2,4,256], index: 4, kind: output, shape index: {}]
  %s5 = sld [smem:[#allocation0]]
  $region49: #{residual_block.1} parent=0
    _
  %s7 = ssub.s32 1, %s5
  %s8 = scalar_select 0, %s7, %s5
  loop: start=0, step=1, limit=4
  $region2: #{residual_block.1} parent=0 // loop_pre_header
    _
  $region3: #{residual_block.1} parent=0 // loop_header
    %s10 = sphi 0, %s14
    %p11 = scmp.ge.s32.totalorder %s10, 4
    %s20 = sphi 0, %s22
    %s23 = sphi 0, %s20
    %s24 = sphi 0, %s23
    %s40 = sphi 0, %s24
    %s44 = sphi 0, %s44
    %s46 = sphi 0, %s44
    %s47 = sphi 0, %s46
    %s61 = sphi 0, %s47
    %s65 = sphi 0, %s65
    %s67 = sphi 0, %s65
    %s68 = sphi 0, %s67
    %s82 = sphi 0, %s68
    %s86 = sphi 0, %s86
    %s88 = sphi 0, %s86
    %s89 = sphi 0, %s88
    %s103 = sphi 0, %s89
    %s109 = sphi 0, %s111
    %s112 = sphi 0, %s109
    %s113 = sphi 0, %s112
    %s129 = sphi 0, %s113
  $region4: #{residual_block.1} parent=0 // loop_header_branch
    %13 = sbr.rel (%p11) target = $region8
  $region5: #{residual_block.1} parent=0 // loop_body
    %s15 = ssub.s32 %s10, 1
    %s16 = ssub.s32 %s10, 2
    %s17 = sadd.s32 %s10, 1
    %s18 = ssub.s32 %s10, %s17
    %p19 = scmp.eq.s32.totalorder %s18, 0
    %s21 = sadd.s32 %s20, 1
    %s22 = scalar_select %p19, %s20, %s21
    %p25 = pneg %p19
    %p26 = scmp.eq.s32.totalorder %s10, 1
    %p27 = por %p25, %p26
    %p28 = scmp.ne.s32.totalorder %s20, %s23
    %p29 = scmp.eq.s32.totalorder %s10, 0
    %p30 = por %p28, %p29
    %p31 = scmp.ne.s32.totalorder %s20, %s23
    %p32 = scmp.eq.s32.totalorder %s15, 1
    %p33 = por %p31, %p32
    %p34 = scmp.ne.s32.totalorder %s23, %s24
    %p35 = scmp.eq.s32.totalorder %s15, 0
    %p36 = por %p34, %p35
    %p37 = scmp.ne.s32.totalorder %s23, %s24
    %p38 = scmp.eq.s32.totalorder %s16, 1
    %p39 = por %p37, %p38
    %p41 = scmp.ne.s32.totalorder %s24, %s40
    %p42 = scmp.eq.s32.totalorder %s16, 0
    %p43 = por %p41, %p42
    %s45 = sadd.s32 %s44, 1
    %p48 = scmp.eq.s32.totalorder %s10, 1
    %p49 = scmp.ne.s32.totalorder %s44, %s46
    %p50 = scmp.eq.s32.totalorder %s10, 0
    %p51 = por %p49, %p50
    %p52 = scmp.ne.s32.totalorder %s44, %s46
    %p53 = scmp.eq.s32.totalorder %s15, 1
    %p54 = por %p52, %p53
    %p55 = scmp.ne.s32.totalorder %s46, %s47
    %p56 = scmp.eq.s32.totalorder %s15, 0
    %p57 = por %p55, %p56
    %p58 = scmp.ne.s32.totalorder %s46, %s47
    %p59 = scmp.eq.s32.totalorder %s16, 1
    %p60 = por %p58, %p59
    %p62 = scmp.ne.s32.totalorder %s47, %s61
    %p63 = scmp.eq.s32.totalorder %s16, 0
    %p64 = por %p62, %p63
    %s66 = sadd.s32 %s65, 1
    %p69 = scmp.eq.s32.totalorder %s10, 1
    %p70 = scmp.ne.s32.totalorder %s65, %s67
    %p71 = scmp.eq.s32.totalorder %s10, 0
    %p72 = por %p70, %p71
    %p73 = scmp.ne.s32.totalorder %s65, %s67
    %p74 = scmp.eq.s32.totalorder %s15, 1
    %p75 = por %p73, %p74
    %p76 = scmp.ne.s32.totalorder %s67, %s68
    %p77 = scmp.eq.s32.totalorder %s15, 0
    %p78 = por %p76, %p77
    %p79 = scmp.ne.s32.totalorder %s67, %s68
    %p80 = scmp.eq.s32.totalorder %s16, 1
    %p81 = por %p79, %p80
    %p83 = scmp.ne.s32.totalorder %s68, %s82
    %p84 = scmp.eq.s32.totalorder %s16, 0
    %p85 = por %p83, %p84
    %s87 = sadd.s32 %s86, 1
    %p90 = scmp.eq.s32.totalorder %s10, 1
    %p91 = scmp.ne.s32.totalorder %s86, %s88
    %p92 = scmp.eq.s32.totalorder %s10, 0
    %p93 = por %p91, %p92
    %p94 = scmp.ne.s32.totalorder %s86, %s88
    %p95 = scmp.eq.s32.totalorder %s15, 1
    %p96 = por %p94, %p95
    %p97 = scmp.ne.s32.totalorder %s88, %s89
    %p98 = scmp.eq.s32.totalorder %s15, 0
    %p99 = por %p97, %p98
    %p100 = scmp.ne.s32.totalorder %s88, %s89
    %p101 = scmp.eq.s32.totalorder %s16, 1
    %p102 = por %p100, %p101
    %p104 = scmp.ne.s32.totalorder %s89, %s103
    %p105 = scmp.eq.s32.totalorder %s16, 0
    %p106 = por %p104, %p105
    %s107 = ssub.s32 %s10, %s17
    %p108 = scmp.eq.s32.totalorder %s107, 0
    %s110 = sadd.s32 %s109, 1
    %s111 = scalar_select %p108, %s109, %s110
    %p114 = pneg %p108
    %p115 = scmp.eq.s32.totalorder %s10, 1
    %p116 = por %p114, %p115
    %p117 = scmp.ne.s32.totalorder %s109, %s112
    %p118 = scmp.eq.s32.totalorder %s10, 0
    %p119 = por %p117, %p118
    %p120 = scmp.ne.s32.totalorder %s109, %s112
    %p121 = scmp.eq.s32.totalorder %s15, 1
    %p122 = por %p120, %p121
    %p123 = scmp.ne.s32.totalorder %s112, %s113
    %p124 = scmp.eq.s32.totalorder %s15, 0
    %p125 = por %p123, %p124
    %p126 = scmp.ne.s32.totalorder %s112, %s113
    %p127 = scmp.eq.s32.totalorder %s16, 1
    %p128 = por %p126, %p127
    %p130 = scmp.ne.s32.totalorder %s113, %s129
    %p131 = scmp.eq.s32.totalorder %s16, 0
    %p132 = por %p130, %p131
    %p133 = scmp.le.s32.totalorder 1, %s10
    %p134 = scmp.lt.s32.totalorder %s10, 3
    %p135 = pnand %p133, %p134
    %p136 = pneg %p135
    // Predicated region
    $region9: #{residual_block.1} parent=5 // pred_check
      _
    $region10: #{residual_block.1} parent=5 // pred_check_branch
      %138 = sbr.rel (%p135) target = $region12
    $region11: #{residual_block.1} parent=5 // pred_region
      %s139 = ssub.s32 %s10, 1
      // Predicated region
      $region13: #{residual_block.1} parent=11 // pred_check
        %p140 = pneg %p57
      $region14: #{residual_block.1} parent=11 // pred_check_branch
        %142 = sbr.rel (%p140) target = $region16
      $region15: #{residual_block.1} parent=11 // pred_region
        _
      $region16: #{residual_block.1} parent=11 // pred_fallthru
        _
      // Predicated region
      $region17: #{residual_block.1} parent=11 // pred_check
        %p143 = pneg %p78
      $region18: #{residual_block.1} parent=11 // pred_check_branch
        %145 = sbr.rel (%p143) target = $region20
      $region19: #{residual_block.1} parent=11 // pred_region
        _
      $region20: #{residual_block.1} parent=11 // pred_fallthru
        _
      // Predicated region
      $region21: #{residual_block.1} parent=11 // pred_check
        %p146 = pneg %p99
      $region22: #{residual_block.1} parent=11 // pred_check_branch
        %148 = sbr.rel (%p146) target = $region24
      $region23: #{residual_block.1} parent=11 // pred_region
        _
      $region24: #{residual_block.1} parent=11 // pred_fallthru
        _
    $region12: #{residual_block.1} parent=5 // pred_fallthru
      _
    %p149 = scmp.lt.s32.totalorder %s10, 2
    // Predicated region
    $region25: #{residual_block.1} parent=5 // pred_check
      %p150 = pneg %p149
    $region26: #{residual_block.1} parent=5 // pred_check_branch
      %152 = sbr.rel (%p150) target = $region28
    $region27: #{residual_block.1} parent=5 // pred_region
      // Predicated region
      $region29: #{residual_block.1} parent=27 // pred_check
        %p153 = pneg %p30
      $region30: #{residual_block.1} parent=27 // pred_check_branch
        %155 = sbr.rel (%p153) target = $region32
      $region31: #{residual_block.1} parent=27 // pred_region
        %p156 = scmp.lt.s32.totalorder %s10, 1
        %s157 = scalar_select %p156, %s10, 1
        %s158 = smul.addr %s157, 2
        %s159 = smul.addr %s158, 4
        %s160 = scalar_lea.vmem %s0, %s159
      $region32: #{residual_block.1} parent=27 // pred_fallthru
        _
    $region28: #{residual_block.1} parent=5 // pred_fallthru
      _
    %p161 = scmp.le.s32.totalorder 1, %s10
    %p162 = scmp.lt.s32.totalorder %s10, 3
    %p163 = pnand %p161, %p162
    %p164 = pneg %p163
    // Predicated region
    $region33: #{residual_block.1} parent=5 // pred_check
      _
    $region34: #{residual_block.1} parent=5 // pred_check_branch
      %166 = sbr.rel (%p163) target = $region36
    $region35: #{residual_block.1} parent=5 // pred_region
      %s167 = ssub.s32 %s10, 1
      %p168 = scmp.lt.s32.totalorder %s15, 1
      %s169 = scalar_select %p168, %s15, 1
      %s170 = smul.addr %s169, 2
      %s171 = smul.addr %s170, 4
      %s172 = scalar_lea.vmem %s0, %s171
      %p173 = pneg %p36
      %p174 = pneg %p33
      %p175 = pneg %p57
      %p176 = pneg %p54
      %p177 = pneg %p78
      %p178 = pneg %p75
      %p179 = pneg %p99
      %p180 = pneg %p96
      %p181 = pneg %p125
      %p182 = pneg %p122
      %p183 = scmp.lt.s32.totalorder %s15, 1
      %s184 = scalar_select %p183, %s15, 1
      %s185 = smul.addr %s184, 2
      %s186 = smul.addr %s185, 4
      %s187 = scalar_lea.vmem %s4, %s186
      %p188 = scmp.lt.s32.totalorder %s15, 1
      %s189 = scalar_select %p188, %s15, 1
      %s190 = smul.addr %s189, 2
      %s191 = smul.addr %s190, 4
      %s192 = scalar_lea.vmem %s0, %s191
      %p193 = scmp.lt.s32.totalorder %s15, 1
      %s194 = scalar_select %p193, %s15, 1
      %s195 = smul.addr %s194, 2
      %s196 = smul.addr %s195, 4
      %s197 = scalar_lea.vmem %s4, %s196
      %vm199 = vcmask 132096
      %200 = vst.msk [vmem:[#allocation2] sm:$0x3] %vm199, 0
      %vm201 = vcmask 271496
      %202 = vst.msk [vmem:[#allocation2 + $0x4] sm:$0x3] %vm201, 0
      %v203 = vld [vmem:[%s192] sm:$0xff]
      %v204 = vld [vmem:[%s3] sm:$0x3]
      %v206 = vcombine.high %v203, %v203
      %v208 = vpack.c.bf16 %v203, %v203
      %v209 = vpack.c.bf16 %v206, %v206
      %v212 = vcombine.low %v208, %v209
      %v214 = vunpack.c.l.s4 1983009808
      %v215 = vunpack.c.0.s8 %v214
      %v216 = vlaneseq
      %v217 = vshrl.u32 %v216, 7
      %v218 = vsub.s32 %v215, %v217
      %v219 = vrot.slane %v212, %v218
      %220 = vrot.lane.b32.xlu0 %v219, 17
      %v221 = vpop.permute.xlu0 %220
      %v222 = vrot.slane %v221, 6
      %vm223 = vcmask 138240
      %v224 = vsel %vm223, %v222, %v221
      %vm226 = vcmask 1041544
      %vm227 = vcmask 1043458
      %vm228 = vmor %vm227, %vm226
      %vm229 = vcmask 136196
      %vm230 = vmor %vm229, %vm228
      %231 = vst.msk [vmem:[#allocation2] sm:$0x3f] %vm230, %v224
      %v232 = vld [vmem:[#allocation2] sm:$0xf]
      %v235 = vunpack.c.l.s4 1966171168
      %v236 = vunpack.c.0.s8 %v235
      %v237 = vlaneseq
      %v238 = vshrl.u32 %v237, 7
      %v239 = vsub.s32 %v236, %v238
      %v240 = vrot.slane %v204, %v239
      %v241 = vcombine.high %v240, %v240
      %v243 = vunpack.c.l.s4 1966171168
      %v244 = vunpack.c.0.s8 %v243
      %v245 = vlaneseq
      %v246 = vshrl.u32 %v245, 7
      %v247 = vsub.s32 %v244, %v246
      %v248 = vrot.slane %v240, %v247
      %v250 = vunpack.c.l.s4 1966171168
      %v251 = vunpack.c.0.s8 %v250
      %v252 = vlaneseq
      %v253 = vshrl.u32 %v252, 7
      %v254 = vsub.s32 %v251, %v253
      %v255 = vrot.slane %v241, %v254
      %v257 = vpack.i.b16 %v248, %v248
      %v259 = vlaneseq
      %v260 = vshrl.u32 %v259, 7
      %v261 = vsub.s32 0, %v260
      %v262 = vrot.slane %v257, %v261
      %v264 = vpack.i.b16 %v255, %v255
      %v266 = vlaneseq
      %v267 = vshrl.u32 %v266, 7
      %v268 = vsub.s32 0, %v267
      %v269 = vrot.slane %v264, %v268
      %v272 = vcombine.low %v262, %v269
      %v274 = vunpack.c.l.s4 1983009808
      %v275 = vunpack.c.0.s8 %v274
      %v276 = vlaneseq
      %v277 = vshrl.u32 %v276, 7
      %v278 = vsub.s32 %v275, %v277
      %v279 = vrot.slane %v272, %v278
      %v281 = vmul.bf16 %v232, %v279
      %v284 = vunpack.c.l.s4 1983009808
      %v285 = vunpack.c.0.s8 %v284
      %v286 = vlaneseq
      %v287 = vshrl.u32 %v286, 7
      %v288 = vsub.s32 %v285, %v287
      %v289 = vrot.slane %v281, %v288
      %291 = vst [vmem:[#allocation3] sm:$0x33] %v289
      %v292 = vld [vmem:[#allocation2] sm:$0x3f]
      %v294 = vcombine.low %v292, %v292
      %v296 = vunpack.c.l.s4 1983009808
      %v297 = vunpack.c.0.s8 %v296
      %v298 = vlaneseq
      %v299 = vshrl.u32 %v298, 7
      %v300 = vsub.s32 %v297, %v299
      %v301 = vrot.slane %v294, %v300
      %v303 = vunpack.c.l.s4 1983009808
      %v304 = vunpack.c.0.s8 %v303
      %v305 = vlaneseq
      %v306 = vshrl.u32 %v305, 7
      %v307 = vsub.s32 %v304, %v306
      %v308 = vrot.slane %v292, %v307
      %309 = vrot.lane.b32.xlu0 %v301, 127
      %v310 = vpop.permute.xlu0 %309
      %311 = vrot.lane.b32.xlu0 %v308, 127
      %v312 = vpop.permute.xlu0 %311
      %v313 = vrot.slane %v310, 4
      %v314 = vrot.slane %v312, 4
      %vm315 = vcmask 1043456
      %v316 = vsel %vm315, %v313, %v314
      %vm317 = vcmask 1039360
      %v318 = vsel %vm317, %v310, %v316
      %320 = vst [vmem:[#allocation3] sm:$0xcc] %v318
      %v321 = vld [vmem:[#allocation2] sm:$0x3f]
      %v322 = vshrl.u32 %v248, 16
      %v323 = vpack.i.b16 %v322, %v322
      %v325 = vlaneseq
      %v326 = vshrl.u32 %v325, 7
      %v327 = vsub.s32 0, %v326
      %v328 = vrot.slane %v323, %v327
      %v329 = vshrl.u32 %v255, 16
      %v330 = vpack.i.b16 %v329, %v329
      %v332 = vlaneseq
      %v333 = vshrl.u32 %v332, 7
      %v334 = vsub.s32 0, %v333
      %v335 = vrot.slane %v330, %v334
      %v338 = vcombine.low %v328, %v335
      %v340 = vunpack.c.l.s4 1983009808
      %v341 = vunpack.c.0.s8 %v340
      %v342 = vlaneseq
      %v343 = vshrl.u32 %v342, 7
      %v344 = vsub.s32 %v341, %v343
      %v345 = vrot.slane %v338, %v344
      %346 = vrot.lane.b32.xlu0 %v345, 2
      %v347 = vpop.permute.xlu0 %346
      %v348 = vrot.slane %v347, 6
      %vm349 = vcmask 15360
      %v350 = vsel %vm349, %v348, %v347
      %v352 = vmul.bf16 %v321, %v350
      %v354 = vcombine.high %v352, %v352
      %v356 = vunpack.c.l.s4 1983009808
      %v357 = vunpack.c.0.s8 %v356
      %v358 = vlaneseq
      %v359 = vshrl.u32 %v358, 7
      %v360 = vsub.s32 %v357, %v359
      %v361 = vrot.slane %v352, %v360
      %v363 = vunpack.c.l.s4 1983009808
      %v364 = vunpack.c.0.s8 %v363
      %v365 = vlaneseq
      %v366 = vshrl.u32 %v365, 7
      %v367 = vsub.s32 %v364, %v366
      %v368 = vrot.slane %v354, %v367
      %369 = vrot.lane.b32.xlu0 %v361, 126
      %v370 = vpop.permute.xlu0 %369
      %371 = vrot.lane.b32.xlu0 %v368, 126
      %v372 = vpop.permute.xlu0 %371
      %v373 = vrot.slane %v370, 4
      %v374 = vrot.slane %v372, 4
      %v375 = vsel %vm315, %v373, %v374
      %vm376 = vcmask 1031168
      %v377 = vsel %vm376, %v370, %v375
      %379 = vst [vmem:[#allocation3 + $0x8] sm:$0x33] %v377
      %v380 = vld [vmem:[#allocation2] sm:$0x3f]
      %381 = vrot.lane.b32.xlu0 %v279, 16
      %v382 = vpop.permute.xlu0 %381
      %v383 = vrot.slane %v382, 6
      %vm384 = vcmask 130048
      %v385 = vsel %vm384, %v383, %v382
      %v387 = vmul.bf16 %v380, %v385
      %v389 = vcombine.low %v387, %v387
      %v391 = vunpack.c.l.s4 1983009808
      %v392 = vunpack.c.0.s8 %v391
      %v393 = vlaneseq
      %v394 = vshrl.u32 %v393, 7
      %v395 = vsub.s32 %v392, %v394
      %v396 = vrot.slane %v389, %v395
      %v398 = vunpack.c.l.s4 1983009808
      %v399 = vunpack.c.0.s8 %v398
      %v400 = vlaneseq
      %v401 = vshrl.u32 %v400, 7
      %v402 = vsub.s32 %v399, %v401
      %v403 = vrot.slane %v387, %v402
      %404 = vrot.lane.b32.xlu0 %v396, 112
      %v405 = vpop.permute.xlu0 %404
      %406 = vrot.lane.b32.xlu0 %v403, 112
      %v407 = vpop.permute.xlu0 %406
      %v408 = vrot.slane %v405, 4
      %v409 = vrot.slane %v407, 4
      %v410 = vsel %vm315, %v408, %v409
      %vm411 = vcmask 916480
      %v412 = vsel %vm411, %v405, %v410
      %414 = vst [vmem:[#allocation3 + $0x8] sm:$0xcc] %v412
      %v415 = vld [vmem:[#allocation2] sm:$0x3f]
      %v417 = vcombine.high %v415, %v415
      %v419 = vunpack.c.l.s4 1983009808
      %v420 = vunpack.c.0.s8 %v419
      %v421 = vlaneseq
      %v422 = vshrl.u32 %v421, 7
      %v423 = vsub.s32 %v420, %v422
      %v424 = vrot.slane %v415, %v423
      %v426 = vunpack.c.l.s4 1983009808
      %v427 = vunpack.c.0.s8 %v426
      %v428 = vlaneseq
      %v429 = vshrl.u32 %v428, 7
      %v430 = vsub.s32 %v427, %v429
      %v431 = vrot.slane %v417, %v430
      %432 = vrot.lane.b32.xlu0 %v424, 111
      %v433 = vpop.permute.xlu0 %432
      %434 = vrot.lane.b32.xlu0 %v431, 111
      %v435 = vpop.permute.xlu0 %434
      %v436 = vrot.slane %v433, 4
      %v437 = vrot.slane %v435, 4
      %v438 = vsel %vm315, %v436, %v437
      %vm439 = vcmask 908288
      %v440 = vsel %vm439, %v433, %v438
      %442 = vst [vmem:[#allocation3 + $0x10] sm:$0x33] %v440
      %v443 = vld [vmem:[#allocation2] sm:$0x3f]
      %444 = vrot.lane.b32.xlu0 %v345, 18
      %v445 = vpop.permute.xlu0 %444
      %v446 = vrot.slane %v445, 6
      %vm447 = vcmask 146432
      %v448 = vsel %vm447, %v446, %v445
      %v450 = vmul.bf16 %v443, %v448
      %v452 = vcombine.low %v450, %v450
      %v454 = vunpack.c.l.s4 1983009808
      %v455 = vunpack.c.0.s8 %v454
      %v456 = vlaneseq
      %v457 = vshrl.u32 %v456, 7
      %v458 = vsub.s32 %v455, %v457
      %v459 = vrot.slane %v452, %v458
      %v461 = vunpack.c.l.s4 1983009808
      %v462 = vunpack.c.0.s8 %v461
      %v463 = vlaneseq
      %v464 = vshrl.u32 %v463, 7
      %v465 = vsub.s32 %v462, %v464
      %v466 = vrot.slane %v450, %v465
      %467 = vrot.lane.b32.xlu0 %v459, 110
      %v468 = vpop.permute.xlu0 %467
      %469 = vrot.lane.b32.xlu0 %v466, 110
      %v470 = vpop.permute.xlu0 %469
      %v471 = vrot.slane %v468, 4
      %v472 = vrot.slane %v470, 4
      %v473 = vsel %vm315, %v471, %v472
      %vm474 = vcmask 900096
      %v475 = vsel %vm474, %v468, %v473
      %477 = vst [vmem:[#allocation3 + $0x10] sm:$0xcc] %v475
      %v478 = vld [vmem:[#allocation2] sm:$0x3f]
      %479 = vrot.lane.b32.xlu0 %v279, 32
      %v480 = vpop.permute.xlu0 %479
      %v481 = vrot.slane %v480, 6
      %vm482 = vcmask 261120
      %v483 = vsel %vm482, %v481, %v480
      %v485 = vmul.bf16 %v478, %v483
      %v487 = vcombine.high %v485, %v485
      %v489 = vunpack.c.l.s4 1983009808
      %v490 = vunpack.c.0.s8 %v489
      %v491 = vlaneseq
      %v492 = vshrl.u32 %v491, 7
      %v493 = vsub.s32 %v490, %v492
      %v494 = vrot.slane %v485, %v493
      %v496 = vunpack.c.l.s4 1983009808
      %v497 = vunpack.c.0.s8 %v496
      %v498 = vlaneseq
      %v499 = vshrl.u32 %v498, 7
      %v500 = vsub.s32 %v497, %v499
      %v501 = vrot.slane %v487, %v500
      %502 = vrot.lane.b32.xlu0 %v494, 96
      %v503 = vpop.permute.xlu0 %502
      %504 = vrot.lane.b32.xlu0 %v501, 96
      %v505 = vpop.permute.xlu0 %504
      %v506 = vrot.slane %v503, 4
      %v507 = vrot.slane %v505, 4
      %v508 = vsel %vm315, %v506, %v507
      %vm509 = vcmask 785408
      %v510 = vsel %vm509, %v503, %v508
      %512 = vst [vmem:[#allocation3 + $0x18] sm:$0x33] %v510
      %v513 = vld [vmem:[#allocation2] sm:$0x3f]
      %v515 = vcombine.low %v513, %v513
      %v517 = vunpack.c.l.s4 1983009808
      %v518 = vunpack.c.0.s8 %v517
      %v519 = vlaneseq
      %v520 = vshrl.u32 %v519, 7
      %v521 = vsub.s32 %v518, %v520
      %v522 = vrot.slane %v515, %v521
      %v524 = vunpack.c.l.s4 1983009808
      %v525 = vunpack.c.0.s8 %v524
      %v526 = vlaneseq
      %v527 = vshrl.u32 %v526, 7
      %v528 = vsub.s32 %v525, %v527
      %v529 = vrot.slane %v513, %v528
      %530 = vrot.lane.b32.xlu0 %v522, 95
      %v531 = vpop.permute.xlu0 %530
      %532 = vrot.lane.b32.xlu0 %v529, 95
      %v533 = vpop.permute.xlu0 %532
      %v534 = vrot.slane %v531, 4
      %v535 = vrot.slane %v533, 4
      %v536 = vsel %vm315, %v534, %v535
      %vm537 = vcmask 777216
      %v538 = vsel %vm537, %v531, %v536
      %540 = vst [vmem:[#allocation3 + $0x18] sm:$0xcc] %v538
      %v541 = vld [vmem:[#allocation2] sm:$0x3f]
      %542 = vrot.lane.b32.xlu0 %v345, 34
      %v543 = vpop.permute.xlu0 %542
      %v544 = vrot.slane %v543, 6
      %vm545 = vcmask 277504
      %v546 = vsel %vm545, %v544, %v543
      %v548 = vmul.bf16 %v541, %v546
      %v550 = vcombine.high %v548, %v548
      %v552 = vunpack.c.l.s4 1983009808
      %v553 = vunpack.c.0.s8 %v552
      %v554 = vlaneseq
      %v555 = vshrl.u32 %v554, 7
      %v556 = vsub.s32 %v553, %v555
      %v557 = vrot.slane %v548, %v556
      %v559 = vunpack.c.l.s4 1983009808
      %v560 = vunpack.c.0.s8 %v559
      %v561 = vlaneseq
      %v562 = vshrl.u32 %v561, 7
      %v563 = vsub.s32 %v560, %v562
      %v564 = vrot.slane %v550, %v563
      %565 = vrot.lane.b32.xlu0 %v557, 94
      %v566 = vpop.permute.xlu0 %565
      %567 = vrot.lane.b32.xlu0 %v564, 94
      %v568 = vpop.permute.xlu0 %567
      %v569 = vrot.slane %v566, 4
      %v570 = vrot.slane %v568, 4
      %v571 = vsel %vm315, %v569, %v570
      %vm572 = vcmask 769024
      %v573 = vsel %vm572, %v566, %v571
      %575 = vst [vmem:[#allocation3 + $0x20] sm:$0x33] %v573
      %v576 = vld [vmem:[%s1] sm:$0x3]
      %v577 = vld [vmem:[#allocation3] sm:$0xff]
      %v578 = vld [vmem:[#allocation3 + $0x8] sm:$0xff]
      %v579 = vld [vmem:[#allocation3 + $0x10] sm:$0xff]
      %v580 = vld [vmem:[#allocation3 + $0x18] sm:$0xff]
      %v581 = vld [vmem:[#allocation3 + $0x20] sm:$0x33]
      %v587 = vunpack.c.l.b16 %v577
      %v588 = vunpack.c.h.b16 %v577
      %v589 = vunpack.c.l.b16 %v578
      %v590 = vunpack.c.h.b16 %v578
      %v591 = vunpack.c.l.b16 %v579
      %v592 = vunpack.c.h.b16 %v579
      %v593 = vunpack.c.l.b16 %v580
      %v594 = vunpack.c.h.b16 %v580
      %v595 = vunpack.c.l.b16 %v581
      %v596 = vunpack.c.h.b16 %v581
      %v597 = vpack.c.b16 %v589, %v587
      %v598 = vpack.c.b16 %v590, %v588
      %v599 = vpack.c.b16 %v593, %v591
      %v600 = vpack.c.b16 %v594, %v592
      %v601 = vpack.c.b16 %v595, %v595
      %v602 = vpack.c.b16 %v596, %v596
      %vm607 = vcmask 293888
      %v609 = vsel %vm607, %v576, 0
      %vm611 = vcmask 1041408
      %v613 = vsel %vm611, %v601, 0
      %v616 = vsel %vm611, %v602, 0
      %618 = vmatprep.subr.bf16.mxu0 %v598
      %619 = vmatpush1.bf16.msra.mxu0 %v597
      %620 = vmatprep.subr.bf16.mxu0 %v600
      %621 = vmatpush1.bf16.msra.mxu0 %v599
      %622 = vmatprep.subr.bf16.mxu0 %v616
      %623 = vmatpush1.bf16.msra.mxu0 %v613
      %624 = vmatprep.subr.bf16.mxu0 0
      %625 = vmatpush1.bf16.msra.mxu0 0
      %626 = vmatprep.subr.bf16.mxu0 0
      %627 = vmatpush1.bf16.msra.mxu0 0
      %628 = vmatprep.subr.bf16.mxu0 0
      %629 = vmatpush1.bf16.msra.mxu0 0
      %630 = vmatprep.subr.bf16.mxu0 0
      %631 = vmatpush1.bf16.msra.mxu0 0
      %632 = vmatprep.subr.bf16.mxu0 0
      %633 = vmatpush1.bf16.msra.mxu0 0
      %634 = vmatprep.subr.bf16.mxu0 0
      %635 = vmatpush1.bf16.msra.mxu0 0
      %636 = vmatprep.subr.bf16.mxu0 0
      %637 = vmatpush1.bf16.msra.mxu0 0
      %638 = vmatprep.subr.bf16.mxu0 0
      %639 = vmatpush1.bf16.msra.mxu0 0
      %640 = vmatprep.subr.bf16.mxu0 0
      %641 = vmatpush1.bf16.msra.mxu0 0
      %642 = vmatprep.subr.bf16.mxu0 0
      %643 = vmatpush1.bf16.msra.mxu0 0
      %644 = vmatprep.subr.bf16.mxu0 0
      %645 = vmatpush1.bf16.msra.mxu0 0
      %646 = vmatprep.subr.bf16.mxu0 0
      %647 = vmatpush1.bf16.msra.mxu0 0
      %648 = vmatprep.subr.bf16.mxu0 0
      %649 = vmatpush1.bf16.msra.mxu0 0
      %650 = vmatprep.mubr.bf16.mxu0 0
      %651 = vmatmul.mubr.bf16.gmra.mrb[0].mxu0 %v609
      %v652 = vpop.f32.mrb[0].mxu0
      %v653 = vadd.f32 0.0, %v652
      %v654 = vpop.f32.mrb[0].mxu0
      %v655 = vadd.f32 0.0, %v654
      %v656 = vpop.f32.mrb[0].mxu0
      %v657 = vpop.f32.mrb[0].mxu0
      %658 = vdwg.mxu0
      %vm659 = vcmask 1043456
      %v660 = vsel %vm659, %v653, 0.0
      %v661 = vsel %vm659, %v655, 0.0
      %v662 = vadd.f32 %v660, %v661
      %663 = vadd.xlane.f32.xlu0 %v662
      %v664 = vpop.xlane.xlu0 %663
      %v665 = vmul.f32 %v653, %v653
      %v666 = vmul.f32 %v655, %v655
      %v667 = vsel %vm659, %v665, 0.0
      %v668 = vsel %vm659, %v666, 0.0
      %v669 = vadd.f32 %v667, %v668
      %670 = vadd.xlane.f32.xlu0 %v669
      %v671 = vpop.xlane.xlu0 %670
      %v672 = vmul.f32 %v664, 0.00390625
      %v673 = vmul.f32 %v671, 0.00390625
      %v674 = vmul.f32 %v672, %v672
      %v675 = vsub.f32 %v673, %v674
      %v676 = vmax.f32 %v675, 0.0
      %v677 = vsub.f32 %v653, %v672
      %v678 = vsub.f32 %v655, %v672
      %v679 = vadd.f32 %v676, 1e-05
      %v680 = vrsqrt.pop %v679
      %v681 = vmul.f32 %v677, %v680
      %v682 = vmul.f32 %v678, %v680
      %v683 = vmax.f32 %v681, 0.0
      %v684 = vmax.f32 %v682, 0.0
      %v685 = vpack.c.bf16 %v683, %v683
      %v686 = vpack.c.bf16 %v684, %v684
      %v689 = vcombine.low %v685, %v686
      %v691 = vunpack.c.l.s4 1983009808
      %v692 = vunpack.c.0.s8 %v691
      %v693 = vlaneseq
      %v694 = vshrl.u32 %v693, 7
      %v695 = vsub.s32 %v692, %v694
      %v696 = vrot.slane %v689, %v695
      %697 = vrot.lane.b32.xlu0 %v696, 17
      %v698 = vpop.permute.xlu0 %697
      %v699 = vrot.slane %v698, 6
      %v700 = vsel %vm223, %v699, %v698
      %702 = vst.msk [vmem:[#allocation2] sm:$0x3f] %vm230, %v700
      %v703 = vld [vmem:[#allocation2] sm:$0xf]
      %v704 = vmul.bf16 %v703, %v279
      %v707 = vunpack.c.l.s4 1983009808
      %v708 = vunpack.c.0.s8 %v707
      %v709 = vlaneseq
      %v710 = vshrl.u32 %v709, 7
      %v711 = vsub.s32 %v708, %v710
      %v712 = vrot.slane %v704, %v711
      %714 = vst [vmem:[#allocation3] sm:$0x33] %v712
      %v715 = vld [vmem:[#allocation2] sm:$0x3f]
      %v717 = vcombine.low %v715, %v715
      %v719 = vunpack.c.l.s4 1983009808
      %v720 = vunpack.c.0.s8 %v719
      %v721 = vlaneseq
      %v722 = vshrl.u32 %v721, 7
      %v723 = vsub.s32 %v720, %v722
      %v724 = vrot.slane %v717, %v723
      %v726 = vunpack.c.l.s4 1983009808
      %v727 = vunpack.c.0.s8 %v726
      %v728 = vlaneseq
      %v729 = vshrl.u32 %v728, 7
      %v730 = vsub.s32 %v727, %v729
      %v731 = vrot.slane %v715, %v730
      %732 = vrot.lane.b32.xlu0 %v724, 127
      %v733 = vpop.permute.xlu0 %732
      %734 = vrot.lane.b32.xlu0 %v731, 127
      %v735 = vpop.permute.xlu0 %734
      %v736 = vrot.slane %v733, 4
      %v737 = vrot.slane %v735, 4
      %v738 = vsel %vm315, %v736, %v737
      %v739 = vsel %vm317, %v733, %v738
      %741 = vst [vmem:[#allocation3] sm:$0xcc] %v739
      %v742 = vld [vmem:[#allocation2] sm:$0x3f]
      %v743 = vmul.bf16 %v742, %v350
      %v745 = vcombine.high %v743, %v743
      %v747 = vunpack.c.l.s4 1983009808
      %v748 = vunpack.c.0.s8 %v747
      %v749 = vlaneseq
      %v750 = vshrl.u32 %v749, 7
      %v751 = vsub.s32 %v748, %v750
      %v752 = vrot.slane %v743, %v751
      %v754 = vunpack.c.l.s4 1983009808
      %v755 = vunpack.c.0.s8 %v754
      %v756 = vlaneseq
      %v757 = vshrl.u32 %v756, 7
      %v758 = vsub.s32 %v755, %v757
      %v759 = vrot.slane %v745, %v758
      %760 = vrot.lane.b32.xlu0 %v752, 126
      %v761 = vpop.permute.xlu0 %760
      %762 = vrot.lane.b32.xlu0 %v759, 126
      %v763 = vpop.permute.xlu0 %762
      %v764 = vrot.slane %v761, 4
      %v765 = vrot.slane %v763, 4
      %v766 = vsel %vm315, %v764, %v765
      %v767 = vsel %vm376, %v761, %v766
      %769 = vst [vmem:[#allocation3 + $0x8] sm:$0x33] %v767
      %v770 = vld [vmem:[#allocation2] sm:$0x3f]
      %v771 = vmul.bf16 %v770, %v385
      %v773 = vcombine.low %v771, %v771
      %v775 = vunpack.c.l.s4 1983009808
      %v776 = vunpack.c.0.s8 %v775
      %v777 = vlaneseq
      %v778 = vshrl.u32 %v777, 7
      %v779 = vsub.s32 %v776, %v778
      %v780 = vrot.slane %v773, %v779
      %v782 = vunpack.c.l.s4 1983009808
      %v783 = vunpack.c.0.s8 %v782
      %v784 = vlaneseq
      %v785 = vshrl.u32 %v784, 7
      %v786 = vsub.s32 %v783, %v785
      %v787 = vrot.slane %v771, %v786
      %788 = vrot.lane.b32.xlu0 %v780, 112
      %v789 = vpop.permute.xlu0 %788
      %790 = vrot.lane.b32.xlu0 %v787, 112
      %v791 = vpop.permute.xlu0 %790
      %v792 = vrot.slane %v789, 4
      %v793 = vrot.slane %v791, 4
      %v794 = vsel %vm315, %v792, %v793
      %v795 = vsel %vm411, %v789, %v794
      %797 = vst [vmem:[#allocation3 + $0x8] sm:$0xcc] %v795
      %v798 = vld [vmem:[#allocation2] sm:$0x3f]
      %v800 = vcombine.high %v798, %v798
      %v802 = vunpack.c.l.s4 1983009808
      %v803 = vunpack.c.0.s8 %v802
      %v804 = vlaneseq
      %v805 = vshrl.u32 %v804, 7
      %v806 = vsub.s32 %v803, %v805
      %v807 = vrot.slane %v798, %v806
      %v809 = vunpack.c.l.s4 1983009808
      %v810 = vunpack.c.0.s8 %v809
      %v811 = vlaneseq
      %v812 = vshrl.u32 %v811, 7
      %v813 = vsub.s32 %v810, %v812
      %v814 = vrot.slane %v800, %v813
      %815 = vrot.lane.b32.xlu0 %v807, 111
      %v816 = vpop.permute.xlu0 %815
      %817 = vrot.lane.b32.xlu0 %v814, 111
      %v818 = vpop.permute.xlu0 %817
      %v819 = vrot.slane %v816, 4
      %v820 = vrot.slane %v818, 4
      %v821 = vsel %vm315, %v819, %v820
      %v822 = vsel %vm439, %v816, %v821
      %824 = vst [vmem:[#allocation3 + $0x10] sm:$0x33] %v822
      %v825 = vld [vmem:[#allocation2] sm:$0x3f]
      %v826 = vmul.bf16 %v825, %v448
      %v828 = vcombine.low %v826, %v826
      %v830 = vunpack.c.l.s4 1983009808
      %v831 = vunpack.c.0.s8 %v830
      %v832 = vlaneseq
      %v833 = vshrl.u32 %v832, 7
      %v834 = vsub.s32 %v831, %v833
      %v835 = vrot.slane %v828, %v834
      %v837 = vunpack.c.l.s4 1983009808
      %v838 = vunpack.c.0.s8 %v837
      %v839 = vlaneseq
      %v840 = vshrl.u32 %v839, 7
      %v841 = vsub.s32 %v838, %v840
      %v842 = vrot.slane %v826, %v841
      %843 = vrot.lane.b32.xlu0 %v835, 110
      %v844 = vpop.permute.xlu0 %843
      %845 = vrot.lane.b32.xlu0 %v842, 110
      %v846 = vpop.permute.xlu0 %845
      %v847 = vrot.slane %v844, 4
      %v848 = vrot.slane %v846, 4
      %v849 = vsel %vm315, %v847, %v848
      %v850 = vsel %vm474, %v844, %v849
      %852 = vst [vmem:[#allocation3 + $0x10] sm:$0xcc] %v850
      %v853 = vld [vmem:[#allocation2] sm:$0x3f]
      %v854 = vmul.bf16 %v853, %v483
      %v856 = vcombine.high %v854, %v854
      %v858 = vunpack.c.l.s4 1983009808
      %v859 = vunpack.c.0.s8 %v858
      %v860 = vlaneseq
      %v861 = vshrl.u32 %v860, 7
      %v862 = vsub.s32 %v859, %v861
      %v863 = vrot.slane %v854, %v862
      %v865 = vunpack.c.l.s4 1983009808
      %v866 = vunpack.c.0.s8 %v865
      %v867 = vlaneseq
      %v868 = vshrl.u32 %v867, 7
      %v869 = vsub.s32 %v866, %v868
      %v870 = vrot.slane %v856, %v869
      %871 = vrot.lane.b32.xlu0 %v863, 96
      %v872 = vpop.permute.xlu0 %871
      %873 = vrot.lane.b32.xlu0 %v870, 96
      %v874 = vpop.permute.xlu0 %873
      %v875 = vrot.slane %v872, 4
      %v876 = vrot.slane %v874, 4
      %v877 = vsel %vm315, %v875, %v876
      %v878 = vsel %vm509, %v872, %v877
      %880 = vst [vmem:[#allocation3 + $0x18] sm:$0x33] %v878
      %v881 = vld [vmem:[#allocation2] sm:$0x3f]
      %v883 = vcombine.low %v881, %v881
      %v885 = vunpack.c.l.s4 1983009808
      %v886 = vunpack.c.0.s8 %v885
      %v887 = vlaneseq
      %v888 = vshrl.u32 %v887, 7
      %v889 = vsub.s32 %v886, %v888
      %v890 = vrot.slane %v883, %v889
      %v892 = vunpack.c.l.s4 1983009808
      %v893 = vunpack.c.0.s8 %v892
      %v894 = vlaneseq
      %v895 = vshrl.u32 %v894, 7
      %v896 = vsub.s32 %v893, %v895
      %v897 = vrot.slane %v881, %v896
      %898 = vrot.lane.b32.xlu0 %v890, 95
      %v899 = vpop.permute.xlu0 %898
      %900 = vrot.lane.b32.xlu0 %v897, 95
      %v901 = vpop.permute.xlu0 %900
      %v902 = vrot.slane %v899, 4
      %v903 = vrot.slane %v901, 4
      %v904 = vsel %vm315, %v902, %v903
      %v905 = vsel %vm537, %v899, %v904
      %907 = vst [vmem:[#allocation3 + $0x18] sm:$0xcc] %v905
      %v908 = vld [vmem:[#allocation2] sm:$0x3f]
      %v909 = vmul.bf16 %v908, %v546
      %v911 = vcombine.high %v909, %v909
      %v913 = vunpack.c.l.s4 1983009808
      %v914 = vunpack.c.0.s8 %v913
      %v915 = vlaneseq
      %v916 = vshrl.u32 %v915, 7
      %v917 = vsub.s32 %v914, %v916
      %v918 = vrot.slane %v909, %v917
      %v920 = vunpack.c.l.s4 1983009808
      %v921 = vunpack.c.0.s8 %v920
      %v922 = vlaneseq
      %v923 = vshrl.u32 %v922, 7
      %v924 = vsub.s32 %v921, %v923
      %v925 = vrot.slane %v911, %v924
      %926 = vrot.lane.b32.xlu0 %v918, 94
      %v927 = vpop.permute.xlu0 %926
      %928 = vrot.lane.b32.xlu0 %v925, 94
      %v929 = vpop.permute.xlu0 %928
      %v930 = vrot.slane %v927, 4
      %v931 = vrot.slane %v929, 4
      %v932 = vsel %vm315, %v930, %v931
      %v933 = vsel %vm572, %v927, %v932
      %935 = vst [vmem:[#allocation3 + $0x20] sm:$0x33] %v933
      %v936 = vld [vmem:[%s2] sm:$0x3]
      %v937 = vld [vmem:[#allocation3] sm:$0xff]
      %v938 = vld [vmem:[#allocation3 + $0x8] sm:$0xff]
      %v939 = vld [vmem:[#allocation3 + $0x10] sm:$0xff]
      %v940 = vld [vmem:[#allocation3 + $0x18] sm:$0xff]
      %v941 = vld [vmem:[#allocation3 + $0x20] sm:$0x33]
      %v947 = vunpack.c.l.b16 %v937
      %v948 = vunpack.c.h.b16 %v937
      %v949 = vunpack.c.l.b16 %v938
      %v950 = vunpack.c.h.b16 %v938
      %v951 = vunpack.c.l.b16 %v939
      %v952 = vunpack.c.h.b16 %v939
      %v953 = vunpack.c.l.b16 %v940
      %v954 = vunpack.c.h.b16 %v940
      %v955 = vunpack.c.l.b16 %v941
      %v956 = vunpack.c.h.b16 %v941
      %v957 = vpack.c.b16 %v949, %v947
      %v958 = vpack.c.b16 %v950, %v948
      %v959 = vpack.c.b16 %v953, %v951
      %v960 = vpack.c.b16 %v954, %v952
      %v961 = vpack.c.b16 %v955, %v955
      %v962 = vpack.c.b16 %v956, %v956
      %v968 = vsel %vm607, %v936, 0
      %v971 = vsel %vm611, %v961, 0
      %v974 = vsel %vm611, %v962, 0
      %976 = vmatprep.subr.bf16.mxu0 %v958
      %977 = vmatpush1.bf16.msra.mxu0 %v957
      %978 = vmatprep.subr.bf16.mxu0 %v960
      %979 = vmatpush1.bf16.msra.mxu0 %v959
      %980 = vmatprep.subr.bf16.mxu0 %v974
      %981 = vmatpush1.bf16.msra.mxu0 %v971
      %982 = vmatprep.subr.bf16.mxu0 0
      %983 = vmatpush1.bf16.msra.mxu0 0
      %984 = vmatprep.subr.bf16.mxu0 0
      %985 = vmatpush1.bf16.msra.mxu0 0
      %986 = vmatprep.subr.bf16.mxu0 0
      %987 = vmatpush1.bf16.msra.mxu0 0
      %988 = vmatprep.subr.bf16.mxu0 0
      %989 = vmatpush1.bf16.msra.mxu0 0
      %990 = vmatprep.subr.bf16.mxu0 0
      %991 = vmatpush1.bf16.msra.mxu0 0
      %992 = vmatprep.subr.bf16.mxu0 0
      %993 = vmatpush1.bf16.msra.mxu0 0
      %994 = vmatprep.subr.bf16.mxu0 0
      %995 = vmatpush1.bf16.msra.mxu0 0
      %996 = vmatprep.subr.bf16.mxu0 0
      %997 = vmatpush1.bf16.msra.mxu0 0
      %998 = vmatprep.subr.bf16.mxu0 0
      %999 = vmatpush1.bf16.msra.mxu0 0
      %1000 = vmatprep.subr.bf16.mxu0 0
      %1001 = vmatpush1.bf16.msra.mxu0 0
      %1002 = vmatprep.subr.bf16.mxu0 0
      %1003 = vmatpush1.bf16.msra.mxu0 0
      %1004 = vmatprep.subr.bf16.mxu0 0
      %1005 = vmatpush1.bf16.msra.mxu0 0
      %1006 = vmatprep.subr.bf16.mxu0 0
      %1007 = vmatpush1.bf16.msra.mxu0 0
      %1008 = vmatprep.mubr.bf16.mxu0 0
      %1009 = vmatmul.mubr.bf16.gmra.mrb[0].mxu0 %v968
      %v1010 = vpop.f32.mrb[0].mxu0
      %v1011 = vadd.f32 0.0, %v1010
      %v1012 = vpop.f32.mrb[0].mxu0
      %v1013 = vadd.f32 0.0, %v1012
      %v1014 = vpop.f32.mrb[0].mxu0
      %v1015 = vpop.f32.mrb[0].mxu0
      %1016 = vdwg.mxu0
      %v1017 = vsel %vm659, %v1011, 0.0
      %v1018 = vsel %vm659, %v1013, 0.0
      %v1019 = vadd.f32 %v1017, %v1018
      %1020 = vadd.xlane.f32.xlu0 %v1019
      %v1021 = vpop.xlane.xlu0 %1020
      %v1022 = vmul.f32 %v1011, %v1011
      %v1023 = vmul.f32 %v1013, %v1013
      %v1024 = vsel %vm659, %v1022, 0.0
      %v1025 = vsel %vm659, %v1023, 0.0
      %v1026 = vadd.f32 %v1024, %v1025
      %1027 = vadd.xlane.f32.xlu0 %v1026
      %v1028 = vpop.xlane.xlu0 %1027
      %v1029 = vmul.f32 %v1021, 0.00390625
      %v1030 = vmul.f32 %v1028, 0.00390625
      %v1031 = vmul.f32 %v1029, %v1029
      %v1032 = vsub.f32 %v1030, %v1031
      %v1033 = vmax.f32 %v1032, 0.0
      %v1034 = vsub.f32 %v1011, %v1029
      %v1035 = vsub.f32 %v1013, %v1029
      %v1036 = vadd.f32 %v1033, 1e-05
      %v1037 = vrsqrt.pop %v1036
      %v1038 = vmul.f32 %v1034, %v1037
      %v1039 = vmul.f32 %v1035, %v1037
      %v1042 = vcombine.low %v1038, %v1039
      %v1044 = vadd.f32 %v203, %v1042
      %1045 = vst [vmem:[%s197] sm:$0xff] %v1044
      %p1046 = scmp.lt.s32.totalorder %s15, 1
      %s1047 = scalar_select %p1046, %s15, 1
      %s1048 = smul.addr %s1047, 2
      %s1049 = smul.addr %s1048, 4
      %s1050 = scalar_lea.vmem %s4, %s1049
      // Predicated region
      $region37: #{residual_block.1} parent=35 // pred_check
        %p1051 = pneg %p122
      $region38: #{residual_block.1} parent=35 // pred_check_branch
        %1053 = sbr.rel (%p1051) target = $region40
      $region39: #{residual_block.1} parent=35 // pred_region
        _
      $region40: #{residual_block.1} parent=35 // pred_fallthru
        _
    $region36: #{residual_block.1} parent=5 // pred_fallthru
      _
    %p1054 = scmp.le.s32.totalorder 2, %s10
    // Predicated region
    $region41: #{residual_block.1} parent=5 // pred_check
      %p1055 = pneg %p1054
    $region42: #{residual_block.1} parent=5 // pred_check_branch
      %1057 = sbr.rel (%p1055) target = $region44
    $region43: #{residual_block.1} parent=5 // pred_region
      %s1058 = ssub.s32 %s10, 2
      // Predicated region
      $region45: #{residual_block.1} parent=43 // pred_check
        %p1059 = pneg %p128
      $region46: #{residual_block.1} parent=43 // pred_check_branch
        %1061 = sbr.rel (%p1059) target = $region48
      $region47: #{residual_block.1} parent=43 // pred_region
        %p1062 = scmp.lt.s32.totalorder %s16, 1
        %s1063 = scalar_select %p1062, %s16, 1
        %s1064 = smul.addr %s1063, 2
        %s1065 = smul.addr %s1064, 4
        %s1066 = scalar_lea.vmem %s4, %s1065
      $region48: #{residual_block.1} parent=43 // pred_fallthru
        _
    $region44: #{residual_block.1} parent=5 // pred_fallthru
      _
  $region6: #{residual_block.1} parent=0 // loop_footer
    %s14 = sadd.s32 1, %s10
  $region7: #{residual_block.1} parent=0 // loop_footer_branch
    %9 = sbr.rel target = $region3
  $region8: #{residual_block.1} parent=0 // loop_exit
    _

</llo_original>
